<compile_context>
chip_gen: v7x
topology: tpu7x:2x2x1
jax: 0.10.0
libtpu: 0.0.40
codegen_flags: <defaults>
</compile_context>

<pallas_src>
import functools

import jax
import jax.numpy as jnp
from jax.experimental import pallas as pl
from jax.experimental.pallas import tpu as pltpu

LANE = 128
SUBLANE = 8
MXU_DTYPE = jnp.bfloat16   # weight-matmul operand dtype (aggregation stays f32)

VMEM_SPEC = pl.BlockSpec(memory_space=pltpu.MemorySpace.VMEM)


def _round_up(x, m):
    return (x + m - 1) // m * m


# ------------------------------ Pallas kernels ------------------------------ #

def _gcn_lin_kernel(a_ref, x_ref, w_ref, b_ref, wf_ref, bf_ref, y_ref,
                    *, num_layers, cat):
    """Conv stack + (concat) + final Linear, everything VMEM-resident.

    a_ref  : (Np, Np)  f32   row-normalized adjacency (mean aggregation)
    x_ref  : (Np, Cp)  f32   lane-padded input features
    w_ref  : (L, Cp, Cp) bf16  conv weights (pre-cast, zero-padded)
    b_ref  : (L, 1, Cp)  f32   conv biases
    wf_ref : (L+1 | 1, Cp, Cp) bf16  final Linear weight split per segment
    bf_ref : (1, Cp)   f32   final Linear bias
    y_ref  : (Np, Cp)  f32   output
    """
    a = a_ref[...]                                   # f32: exact mean aggregation
    h = x_ref[...]
    h_m = h.astype(MXU_DTYPE)                        # single cast per segment

    # concat + final Linear as a running sum of per-segment matmuls.
    y = (jnp.dot(h_m, wf_ref[0], preferred_element_type=jnp.float32)
         if cat else jnp.zeros_like(y_ref))

    for l in range(num_layers):                      # small L -> unrolled
        # original op order: relu( A @ (h @ W + b) )  -> bias handling is exact
        z = jnp.dot(h_m, w_ref[l], preferred_element_type=jnp.float32) + b_ref[l]
        h = jnp.maximum(jnp.dot(a, z, preferred_element_type=jnp.float32), 0.0)
        h_m = h.astype(MXU_DTYPE)
        if cat:
            y = y + jnp.dot(h_m, wf_ref[l + 1],
                            preferred_element_type=jnp.float32)

    if not cat:
        y = jnp.dot(h_m, wf_ref[0], preferred_element_type=jnp.float32)

    y_ref[...] = (y + bf_ref[...]).astype(y_ref.dtype)


def _gcn_cat_kernel(a_ref, x_ref, w_ref, b_ref, slab_ref, *, num_layers):
    """lin=False, cat=True: emit [x | relu(h1) | ... | relu(hL)] (128-wide segs)."""
    cp = x_ref.shape[1]
    a = a_ref[...]
    h = x_ref[...]
    slab_ref[:, 0:cp] = h
    for l in range(num_layers):
        h_m = h.astype(MXU_DTYPE)
        z = jnp.dot(h_m, w_ref[l], preferred_element_type=jnp.float32) + b_ref[l]
        h = jnp.maximum(jnp.dot(a, z, preferred_element_type=jnp.float32), 0.0)
        slab_ref[:, (l + 1) * cp:(l + 2) * cp] = h


def _gcn_last_kernel(a_ref, x_ref, w_ref, b_ref, h_ref, *, num_layers):
    """lin=False, cat=False: emit only the last conv layer's activations."""
    a = a_ref[...]
    h = x_ref[...]
    for l in range(num_layers):
        h_m = h.astype(MXU_DTYPE)
        z = jnp.dot(h_m, w_ref[l], preferred_element_type=jnp.float32) + b_ref[l]
        h = jnp.maximum(jnp.dot(a, z, preferred_element_type=jnp.float32), 0.0)
    h_ref[...] = h


# ------------------------------ glue (plain JAX) ---------------------------- #

def build_mean_adj(edge_index, num_nodes):
    """Row-normalized adjacency: A[i, j] = 1/deg(i) if edge j -> i."""
    src = edge_index[0]
    dst = edge_index[1]
    a = jnp.zeros((num_nodes, num_nodes), jnp.float32)
    a = a.at[dst, src].add(1.0)
    deg = jnp.clip(jnp.sum(a, axis=1, keepdims=True), 1.0, None)
    return a / deg


def init_params(key, in_channels, out_channels, num_layers, cat=True, lin=True):
    """Deterministic Kaiming-uniform-ish init (bound = 1/sqrt(fan_in))."""
    params = {"convs": [], "final": None}
    cin = in_channels
    for _ in range(num_layers):
        key, kw, kb = jax.random.split(key, 3)
        bound = 1.0 / (cin ** 0.5)
        w = jax.random.uniform(kw, (cin, out_channels), jnp.float32, -bound, bound)
        b = jax.random.uniform(kb, (out_channels,), jnp.float32, -bound, bound)
        params["convs"].append((w, b))
        cin = out_channels
    if lin:
        fin = in_channels + num_layers * out_channels if cat else out_channels
        key, kw, kb = jax.random.split(key, 3)
        bound = 1.0 / (fin ** 0.5)
        wf = jax.random.uniform(kw, (fin, out_channels), jnp.float32, -bound, bound)
        bf = jax.random.uniform(kb, (out_channels,), jnp.float32, -bound, bound)
        params["final"] = (wf, bf)
    return params


def prepare_params(params, in_channels, out_channels, cat=True, lin=True):
    """Init-time layout plumbing: pad/stack weights ONCE, pre-cast to MXU_DTYPE.

    Done eagerly at init so the jitted forward carries zero pad/scatter ops.
    """
    num_layers = len(params["convs"])
    cp = _round_up(max(in_channels, out_channels), LANE)   # lane-dense channels

    w_stack = jnp.zeros((num_layers, cp, cp), MXU_DTYPE)
    b_stack = jnp.zeros((num_layers, 1, cp), jnp.float32)
    for l, (w, b) in enumerate(params["convs"]):
        ci, co = w.shape
        w_stack = w_stack.at[l, :ci, :co].set(w.astype(MXU_DTYPE))
        b_stack = b_stack.at[l, 0, :co].set(b)

    packed = {"w": w_stack, "b": b_stack}

    if lin:
        wf, bf = params["final"]
        bf_pad = jnp.zeros((1, cp), jnp.float32).at[0, :out_channels].set(bf)
        if cat:
            # one (cp, cp) block per concat segment (segment 0 = input feats).
            wf_stack = jnp.zeros((num_layers + 1, cp, cp), MXU_DTYPE)
            wf_stack = wf_stack.at[0, :in_channels, :out_channels].set(
                wf[:in_channels].astype(MXU_DTYPE))
            for l in range(num_layers):
                rows = wf[in_channels + l * out_channels:
                          in_channels + (l + 1) * out_channels]
                wf_stack = wf_stack.at[l + 1, :out_channels, :out_channels].set(
                    rows.astype(MXU_DTYPE))
        else:
            wf_stack = jnp.zeros((1, cp, cp), MXU_DTYPE)
            wf_stack = wf_stack.at[0, :out_channels, :out_channels].set(
                wf.astype(MXU_DTYPE))
        packed["wf"] = wf_stack
        packed["bf"] = bf_pad

    return packed


@functools.partial(jax.jit, static_argnames=("cat", "lin", "cout"))
def euclidean_gcn_forward(packed, x, edge_index, edge_attr=None,
                          *, cat=True, lin=True, cout=32):
    # edge_attr is accepted but unused, matching the reference forward().
    n, cin = x.shape
    w_stack = packed["w"]
    b_stack = packed["b"]
    num_layers = w_stack.shape[0]
    cp = w_stack.shape[-1]
    np_ = _round_up(max(n, SUBLANE), SUBLANE)       # sublane-aligned node count

    # Data-dependent prep only (weights were packed at init time).
    a = build_mean_adj(edge_index, n)
    a_pad = jnp.zeros((np_, np_), jnp.float32).at[:n, :n].set(a)
    x_pad = jnp.zeros((np_, cp), jnp.float32).at[:n, :cin].set(x)

    if lin:
        kernel = functools.partial(_gcn_lin_kernel, num_layers=num_layers,
                                   cat=cat)
        y = pl.pallas_call(
            kernel,
            out_shape=jax.ShapeDtypeStruct((np_, cp), jnp.float32),
            in_specs=[VMEM_SPEC] * 6,
            out_specs=VMEM_SPEC,
        )(a_pad, x_pad, w_stack, b_stack, packed["wf"], packed["bf"])
        return y[:n, :cout]

    if cat:
        kernel = functools.partial(_gcn_cat_kernel, num_layers=num_layers)
        slab = pl.pallas_call(
            kernel,
            out_shape=jax.ShapeDtypeStruct((np_, (num_layers + 1) * cp),
                                           jnp.float32),
            in_specs=[VMEM_SPEC] * 4,
            out_specs=VMEM_SPEC,
        )(a_pad, x_pad, w_stack, b_stack)
        pieces = [slab[:n, :cin]]
        pieces += [slab[:n, (l + 1) * cp:(l + 1) * cp + cout]
                   for l in range(num_layers)]
        return jnp.concatenate(pieces, axis=-1)

    kernel = functools.partial(_gcn_last_kernel, num_layers=num_layers)
    h = pl.pallas_call(
        kernel,
        out_shape=jax.ShapeDtypeStruct((np_, cp), jnp.float32),
        in_specs=[VMEM_SPEC] * 4,
        out_specs=VMEM_SPEC,
    )(a_pad, x_pad, w_stack, b_stack)
    return h[:n, :cout]


# ----------------------------------- main ----------------------------------- #

if __name__ == "__main__":
    key = jax.random.PRNGKey(0)

    num_nodes = 16
    in_channels = 4
    out_channels = 32
    num_layers = 2
    num_edges = 40

    key, kx, ke, ka, kp = jax.random.split(key, 5)
    x = jax.random.normal(kx, (num_nodes, in_channels), jnp.float32)
    edge_index = jax.random.randint(ke, (2, num_edges), 0, num_nodes, jnp.int32)
    edge_attr = jax.random.normal(ka, (num_edges, in_channels), jnp.float32)

    params = init_params(kp, in_channels, out_channels, num_layers,
                         cat=True, lin=True)
    packed = prepare_params(params, in_channels, out_channels,
                            cat=True, lin=True)

    out = euclidean_gcn_forward(packed, x, edge_index, edge_attr,
                                cat=True, lin=True, cout=out_channels)
    out = jax.block_until_ready(out)

    assert out.shape == (num_nodes, out_channels), out.shape
    assert jnp.all(jnp.isfinite(out))
    print("KERNEL_OK")
</pallas_src>

<mosaic_0001>
module attributes {stable_mosaic.version = 11 : i64} {
  func.func @_gcn_lin_kernel(%arg0: memref<16x16xf32, #tpu.memory_space<vmem>>, %arg1: memref<16x128xf32, #tpu.memory_space<vmem>>, %arg2: memref<2x128x128xbf16, #tpu.memory_space<vmem>>, %arg3: memref<2x1x128xf32, #tpu.memory_space<vmem>>, %arg4: memref<3x128x128xbf16, #tpu.memory_space<vmem>>, %arg5: memref<1x128xf32, #tpu.memory_space<vmem>>, %arg6: memref<16x128xf32, #tpu.memory_space<vmem>>) attributes {dimension_semantics = [], scalar_prefetch = 0 : i64, scratch_operands = 0 : i64, tpu.core_type = #tpu.core_type<tc>} {
    %c0 = arith.constant 0 : index
    %c0_0 = arith.constant 0 : index
    %0 = vector.load %arg0[%c0, %c0_0] : memref<16x16xf32, #tpu.memory_space<vmem>>, vector<16x16xf32>
    %c0_1 = arith.constant 0 : index
    %c0_2 = arith.constant 0 : index
    %1 = vector.load %arg1[%c0_1, %c0_2] : memref<16x128xf32, #tpu.memory_space<vmem>>, vector<16x128xf32>
    %2 = arith.truncf %1 : vector<16x128xf32> to vector<16x128xbf16>
    %c0_3 = arith.constant 0 : index
    %c0_4 = arith.constant 0 : index
    %c0_5 = arith.constant 0 : index
    %3 = vector.load %arg4[%c0_3, %c0_4, %c0_5] : memref<3x128x128xbf16, #tpu.memory_space<vmem>>, vector<1x128x128xbf16>
    %4 = vector.shape_cast %3 : vector<1x128x128xbf16> to vector<128x128xbf16>
    %cst = arith.constant dense<0.000000e+00> : vector<16x128xf32>
    %5 = tpu.matmul %2, %4, %cst {dimension_numbers = #tpu.dot_dimension_numbers<[1], [0], [0], [1], [0, 0, 1, 1], [], []>} : vector<16x128xbf16>, vector<128x128xbf16>, vector<16x128xf32> -> vector<16x128xf32>
    %c0_6 = arith.constant 0 : index
    %c0_7 = arith.constant 0 : index
    %c0_8 = arith.constant 0 : index
    %6 = vector.load %arg2[%c0_6, %c0_7, %c0_8] : memref<2x128x128xbf16, #tpu.memory_space<vmem>>, vector<1x128x128xbf16>
    %7 = vector.shape_cast %6 : vector<1x128x128xbf16> to vector<128x128xbf16>
    %cst_9 = arith.constant dense<0.000000e+00> : vector<16x128xf32>
    %8 = tpu.matmul %2, %7, %cst_9 {dimension_numbers = #tpu.dot_dimension_numbers<[1], [0], [0], [1], [0, 0, 1, 1], [], []>} : vector<16x128xbf16>, vector<128x128xbf16>, vector<16x128xf32> -> vector<16x128xf32>
    %c0_10 = arith.constant 0 : index
    %c0_11 = arith.constant 0 : index
    %c0_12 = arith.constant 0 : index
    %9 = vector.load %arg3[%c0_10, %c0_11, %c0_12] : memref<2x1x128xf32, #tpu.memory_space<vmem>>, vector<1x1x128xf32>
    %10 = vector.shape_cast %9 : vector<1x1x128xf32> to vector<1x128xf32>
    %11 = vector.broadcast %10 : vector<1x128xf32> to vector<16x128xf32>
    %12 = arith.addf %8, %11 : vector<16x128xf32>
    %cst_13 = arith.constant dense<0.000000e+00> : vector<16x128xf32>
    %13 = tpu.matmul %0, %12, %cst_13 {dimension_numbers = #tpu.dot_dimension_numbers<[1], [0], [0], [1], [0, 0, 1, 1], [], []>} : vector<16x16xf32>, vector<16x128xf32>, vector<16x128xf32> -> vector<16x128xf32>
    %cst_14 = arith.constant 0.000000e+00 : f32
    %14 = vector.broadcast %cst_14 : f32 to vector<16x128xf32>
    %15 = arith.maximumf %13, %14 : vector<16x128xf32>
    %16 = arith.truncf %15 : vector<16x128xf32> to vector<16x128xbf16>
    %c1 = arith.constant 1 : index
    %c0_15 = arith.constant 0 : index
    %c0_16 = arith.constant 0 : index
    %17 = vector.load %arg4[%c1, %c0_15, %c0_16] : memref<3x128x128xbf16, #tpu.memory_space<vmem>>, vector<1x128x128xbf16>
    %18 = vector.shape_cast %17 : vector<1x128x128xbf16> to vector<128x128xbf16>
    %cst_17 = arith.constant dense<0.000000e+00> : vector<16x128xf32>
    %19 = tpu.matmul %16, %18, %cst_17 {dimension_numbers = #tpu.dot_dimension_numbers<[1], [0], [0], [1], [0, 0, 1, 1], [], []>} : vector<16x128xbf16>, vector<128x128xbf16>, vector<16x128xf32> -> vector<16x128xf32>
    %20 = arith.addf %5, %19 : vector<16x128xf32>
    %c1_18 = arith.constant 1 : index
    %c0_19 = arith.constant 0 : index
    %c0_20 = arith.constant 0 : index
    %21 = vector.load %arg2[%c1_18, %c0_19, %c0_20] : memref<2x128x128xbf16, #tpu.memory_space<vmem>>, vector<1x128x128xbf16>
    %22 = vector.shape_cast %21 : vector<1x128x128xbf16> to vector<128x128xbf16>
    %cst_21 = arith.constant dense<0.000000e+00> : vector<16x128xf32>
    %23 = tpu.matmul %16, %22, %cst_21 {dimension_numbers = #tpu.dot_dimension_numbers<[1], [0], [0], [1], [0, 0, 1, 1], [], []>} : vector<16x128xbf16>, vector<128x128xbf16>, vector<16x128xf32> -> vector<16x128xf32>
    %c1_22 = arith.constant 1 : index
    %c0_23 = arith.constant 0 : index
    %c0_24 = arith.constant 0 : index
    %24 = vector.load %arg3[%c1_22, %c0_23, %c0_24] : memref<2x1x128xf32, #tpu.memory_space<vmem>>, vector<1x1x128xf32>
    %25 = vector.shape_cast %24 : vector<1x1x128xf32> to vector<1x128xf32>
    %26 = vector.broadcast %25 : vector<1x128xf32> to vector<16x128xf32>
    %27 = arith.addf %23, %26 : vector<16x128xf32>
    %cst_25 = arith.constant dense<0.000000e+00> : vector<16x128xf32>
    %28 = tpu.matmul %0, %27, %cst_25 {dimension_numbers = #tpu.dot_dimension_numbers<[1], [0], [0], [1], [0, 0, 1, 1], [], []>} : vector<16x16xf32>, vector<16x128xf32>, vector<16x128xf32> -> vector<16x128xf32>
    %cst_26 = arith.constant 0.000000e+00 : f32
    %29 = vector.broadcast %cst_26 : f32 to vector<16x128xf32>
    %30 = arith.maximumf %28, %29 : vector<16x128xf32>
    %31 = arith.truncf %30 : vector<16x128xf32> to vector<16x128xbf16>
    %c2 = arith.constant 2 : index
    %c0_27 = arith.constant 0 : index
    %c0_28 = arith.constant 0 : index
    %32 = vector.load %arg4[%c2, %c0_27, %c0_28] : memref<3x128x128xbf16, #tpu.memory_space<vmem>>, vector<1x128x128xbf16>
    %33 = vector.shape_cast %32 : vector<1x128x128xbf16> to vector<128x128xbf16>
    %cst_29 = arith.constant dense<0.000000e+00> : vector<16x128xf32>
    %34 = tpu.matmul %31, %33, %cst_29 {dimension_numbers = #tpu.dot_dimension_numbers<[1], [0], [0], [1], [0, 0, 1, 1], [], []>} : vector<16x128xbf16>, vector<128x128xbf16>, vector<16x128xf32> -> vector<16x128xf32>
    %35 = arith.addf %20, %34 : vector<16x128xf32>
    %c0_30 = arith.constant 0 : index
    %c0_31 = arith.constant 0 : index
    %36 = vector.load %arg5[%c0_30, %c0_31] : memref<1x128xf32, #tpu.memory_space<vmem>>, vector<1x128xf32>
    %37 = vector.broadcast %36 : vector<1x128xf32> to vector<16x128xf32>
    %38 = arith.addf %35, %37 : vector<16x128xf32>
    %c0_32 = arith.constant 0 : index
    %c0_33 = arith.constant 0 : index
    %39 = vector.load %arg6[%c0_32, %c0_33] : memref<16x128xf32, #tpu.memory_space<vmem>>, vector<16x128xf32>
    tpu.vector_store %arg6[%c0_32, %c0_33], %38 {strides = array<i32>} : memref<16x128xf32, #tpu.memory_space<vmem>>, vector<16x128xf32>,
    return
  }
}

</mosaic_0001>

<llo_original>
// kernel: euclidean_gcn_forward.1
$region0: #{euclidean_gcn_forward.1}
  #allocation0 [shape = 'u32[]', space=smem, size = 0x4, offset = 0x4, fixed_abs, tag = 'smem constant byte address 0x4 - core index']
  #allocation1 [shape = 'u32[144,128]{1,0:T(1,128)}', space=vmem, size = 0x12000, scoped, tag = 'internal scratch']
  %s0 = inlined_call_operand.vmem [shape: f32[16,16], index: 0, kind: input, shape index: {}]
  %s1 = inlined_call_operand.vmem [shape: f32[16,128], index: 1, kind: input, shape index: {}]
  %s2 = inlined_call_operand.vmem [shape: bf16[2,128,128], index: 2, kind: input, shape index: {}]
  %s3 = inlined_call_operand.vmem [shape: f32[2,1,128], index: 3, kind: input, shape index: {}]
  %s4 = inlined_call_operand.vmem [shape: bf16[3,128,128], index: 4, kind: input, shape index: {}]
  %s5 = inlined_call_operand.vmem [shape: f32[1,128], index: 5, kind: input, shape index: {}]
  %s6 = inlined_call_operand.hbm [shape: f32[16,128], index: 6, kind: output, shape index: {}]
  %s7 = sld [smem:[#allocation0]]
  $region34: #{euclidean_gcn_forward.1} parent=0
    _
  %s9 = ssub.s32 1, %s7
  %s10 = scalar_select 0, %s9, %s7
  $region1: #{euclidean_gcn_forward.1} parent=0
    #allocation2 [shape = 'u8[8192]{0}', space=vmem, size = 0x2000, scoped, tag = 'output window, operand 0, single buffered']
    #allocation3 [shape = 's32[1]{0}', space=sflag, size = 0x4, scoped, tag = 'scoped memory for euclidean_gcn_forward.1']
    %11 = vsyncpa [#allocation3], 0
    // Predicated region
    $region2: #{euclidean_gcn_forward.1} parent=1 // pred_check
      _
    $region3: #{euclidean_gcn_forward.1} parent=1 // pred_check_branch
      %13 = sbr.rel (0) target = $region5
    $region4: #{euclidean_gcn_forward.1} parent=1 // pred_region
      _
    $region5: #{euclidean_gcn_forward.1} parent=1 // pred_fallthru
      _
    // Predicated region
    $region6: #{euclidean_gcn_forward.1} parent=1 // pred_check
      _
    $region7: #{euclidean_gcn_forward.1} parent=1 // pred_check_branch
      %15 = sbr.rel (0) target = $region9
    $region8: #{euclidean_gcn_forward.1} parent=1 // pred_region
      _
    $region9: #{euclidean_gcn_forward.1} parent=1 // pred_fallthru
      _
    // Predicated region
    $region10: #{euclidean_gcn_forward.1} parent=1 // pred_check
      _
    $region11: #{euclidean_gcn_forward.1} parent=1 // pred_check_branch
      %17 = sbr.rel (0) target = $region13
    $region12: #{euclidean_gcn_forward.1} parent=1 // pred_region
      _
    $region13: #{euclidean_gcn_forward.1} parent=1 // pred_fallthru
      _
    // Predicated region
    $region14: #{euclidean_gcn_forward.1} parent=1 // pred_check
      _
    $region15: #{euclidean_gcn_forward.1} parent=1 // pred_check_branch
      %19 = sbr.rel (0) target = $region17
    $region16: #{euclidean_gcn_forward.1} parent=1 // pred_region
      _
    $region17: #{euclidean_gcn_forward.1} parent=1 // pred_fallthru
      _
    // Predicated region
    $region18: #{euclidean_gcn_forward.1} parent=1 // pred_check
      _
    $region19: #{euclidean_gcn_forward.1} parent=1 // pred_check_branch
      %21 = sbr.rel (0) target = $region21
    $region20: #{euclidean_gcn_forward.1} parent=1 // pred_region
      _
    $region21: #{euclidean_gcn_forward.1} parent=1 // pred_fallthru
      _
    // Predicated region
    $region22: #{euclidean_gcn_forward.1} parent=1 // pred_check
      _
    $region23: #{euclidean_gcn_forward.1} parent=1 // pred_check_branch
      %23 = sbr.rel (0) target = $region25
    $region24: #{euclidean_gcn_forward.1} parent=1 // pred_region
      _
    $region25: #{euclidean_gcn_forward.1} parent=1 // pred_fallthru
      _
    %v25 = vld [vmem:[%s0] sm:$0xff]
    %v26 = vld [vmem:[%s0 + $0x8] sm:$0xff]
    %v27 = vld [vmem:[%s1] sm:$0xff]
    %v28 = vld [vmem:[%s1 + $0x8] sm:$0xff]
    %v29 = vpack.c.bf16 %v28, %v27
    %v30 = vld [vmem:[%s4] sm:$0xf]
    %v31 = vld [vmem:[%s4 + $0x4] sm:$0xf]
    %v32 = vld [vmem:[%s4 + $0x8] sm:$0xf]
    %v33 = vld [vmem:[%s4 + $0xc] sm:$0xf]
    %v34 = vld [vmem:[%s4 + $0x10] sm:$0xf]
    %v35 = vld [vmem:[%s4 + $0x14] sm:$0xf]
    %v36 = vld [vmem:[%s4 + $0x18] sm:$0xf]
    %v37 = vld [vmem:[%s4 + $0x1c] sm:$0xf]
    %v38 = vld [vmem:[%s4 + $0x20] sm:$0xf]
    %v39 = vld [vmem:[%s4 + $0x24] sm:$0xf]
    %v40 = vld [vmem:[%s4 + $0x28] sm:$0xf]
    %v41 = vld [vmem:[%s4 + $0x2c] sm:$0xf]
    %v42 = vld [vmem:[%s4 + $0x30] sm:$0xf]
    %v43 = vld [vmem:[%s4 + $0x34] sm:$0xf]
    %v44 = vld [vmem:[%s4 + $0x38] sm:$0xf]
    %v45 = vld [vmem:[%s4 + $0x3c] sm:$0xf]
    %v46 = vld [vmem:[%s2] sm:$0xf]
    %v47 = vld [vmem:[%s2 + $0x4] sm:$0xf]
    %v48 = vld [vmem:[%s2 + $0x8] sm:$0xf]
    %v49 = vld [vmem:[%s2 + $0xc] sm:$0xf]
    %v50 = vld [vmem:[%s2 + $0x10] sm:$0xf]
    %v51 = vld [vmem:[%s2 + $0x14] sm:$0xf]
    %v52 = vld [vmem:[%s2 + $0x18] sm:$0xf]
    %v53 = vld [vmem:[%s2 + $0x1c] sm:$0xf]
    %v54 = vld [vmem:[%s2 + $0x20] sm:$0xf]
    %v55 = vld [vmem:[%s2 + $0x24] sm:$0xf]
    %v56 = vld [vmem:[%s2 + $0x28] sm:$0xf]
    %v57 = vld [vmem:[%s2 + $0x2c] sm:$0xf]
    %v58 = vld [vmem:[%s2 + $0x30] sm:$0xf]
    %v59 = vld [vmem:[%s2 + $0x34] sm:$0xf]
    %v60 = vld [vmem:[%s2 + $0x38] sm:$0xf]
    %v61 = vld [vmem:[%s2 + $0x3c] sm:$0xf]
    %v62 = vld [vmem:[%s3] sm:$0x1]
    %v64 = vlaneseq
    %v65 = vshrl.u32 %v64, 7
    %v66 = vsub.s32 0, %v65
    %v67 = vrot.slane %v62, %v66
    %v85 = vunpack.c.l.b16 %v46
    %v86 = vunpack.c.l.b16 %v47
    %v87 = vunpack.c.l.b16 %v48
    %v88 = vunpack.c.l.b16 %v49
    %v89 = vunpack.c.l.b16 %v50
    %v90 = vunpack.c.l.b16 %v51
    %v91 = vunpack.c.l.b16 %v52
    %v92 = vunpack.c.l.b16 %v53
    %v93 = vunpack.c.l.b16 %v54
    %v94 = vunpack.c.l.b16 %v55
    %v95 = vunpack.c.l.b16 %v56
    %v96 = vunpack.c.l.b16 %v57
    %v97 = vunpack.c.l.b16 %v58
    %v98 = vunpack.c.l.b16 %v59
    %v99 = vunpack.c.l.b16 %v60
    %v100 = vunpack.c.l.b16 %v61
    %v101 = vpack.c.b16 %v86, %v85
    %v102 = vpack.c.b16 %v88, %v87
    %v103 = vpack.c.b16 %v90, %v89
    %v104 = vpack.c.b16 %v92, %v91
    %v105 = vpack.c.b16 %v94, %v93
    %v106 = vpack.c.b16 %v96, %v95
    %v107 = vpack.c.b16 %v98, %v97
    %v108 = vpack.c.b16 %v100, %v99
    %117 = vmatprep.subr.bf16.mxu0 0
    %118 = vmatpush1.bf16.msra.mxu0 %v101
    %119 = vmatprep.subr.bf16.mxu0 0
    %120 = vmatpush1.bf16.msra.mxu0 %v102
    %121 = vmatprep.subr.bf16.mxu0 0
    %122 = vmatpush1.bf16.msra.mxu0 %v103
    %123 = vmatprep.subr.bf16.mxu0 0
    %124 = vmatpush1.bf16.msra.mxu0 %v104
    %125 = vmatprep.subr.bf16.mxu0 0
    %126 = vmatpush1.bf16.msra.mxu0 %v105
    %127 = vmatprep.subr.bf16.mxu0 0
    %128 = vmatpush1.bf16.msra.mxu0 %v106
    %129 = vmatprep.subr.bf16.mxu0 0
    %130 = vmatpush1.bf16.msra.mxu0 %v107
    %131 = vmatprep.subr.bf16.mxu0 0
    %132 = vmatpush1.bf16.msra.mxu0 %v108
    %133 = vmatprep.subr.bf16.mxu0 0
    %134 = vmatpush1.bf16.msra.mxu0 0
    %135 = vmatprep.subr.bf16.mxu0 0
    %136 = vmatpush1.bf16.msra.mxu0 0
    %137 = vmatprep.subr.bf16.mxu0 0
    %138 = vmatpush1.bf16.msra.mxu0 0
    %139 = vmatprep.subr.bf16.mxu0 0
    %140 = vmatpush1.bf16.msra.mxu0 0
    %141 = vmatprep.subr.bf16.mxu0 0
    %142 = vmatpush1.bf16.msra.mxu0 0
    %143 = vmatprep.subr.bf16.mxu0 0
    %144 = vmatpush1.bf16.msra.mxu0 0
    %145 = vmatprep.subr.bf16.mxu0 0
    %146 = vmatpush1.bf16.msra.mxu0 0
    %147 = vmatprep.subr.bf16.mxu0 0
    %148 = vmatpush1.bf16.msra.mxu0 0
    %149 = vmatprep.mubr.bf16.mxu0 0
    %150 = vmatmul.mubr.bf16.gmra.mrb[0].mxu0 %v29
    %v151 = vpop.f32.mrb[0].mxu0
    %v152 = vadd.f32 %v67, %v151
    %v153 = vpop.f32.mrb[0].mxu0
    %v154 = vpop.f32.mrb[0].mxu0
    %v155 = vadd.f32 %v67, %v154
    %v156 = vpop.f32.mrb[0].mxu0
    %157 = vdwg.mxu0
    %vm158 = vcmask 130048
    %v160 = vsel %vm158, %v25, 0
    %v163 = vsel %vm158, %v26, 0
    %165 = vmatprep.subr.mxu0 0.0
    %166 = vmatpush1.msra.mxu0 %v152
    %167 = vmatprep.subr.mxu0 0.0
    %168 = vmatpush1.msra.mxu0 %v155
    %169 = vmatprep.subr.mxu0 0.0
    %170 = vmatpush1.msra.mxu0 0.0
    %171 = vmatprep.subr.mxu0 0.0
    %172 = vmatpush1.msra.mxu0 0.0
    %173 = vmatprep.subr.mxu0 0.0
    %174 = vmatpush1.msra.mxu0 0.0
    %175 = vmatprep.subr.mxu0 0.0
    %176 = vmatpush1.msra.mxu0 0.0
    %177 = vmatprep.subr.mxu0 0.0
    %178 = vmatpush1.msra.mxu0 0.0
    %179 = vmatprep.subr.mxu0 0.0
    %180 = vmatpush1.msra.mxu0 0.0
    %181 = vmatprep.subr.mxu0 0.0
    %182 = vmatpush1.msra.mxu0 0.0
    %183 = vmatprep.subr.mxu0 0.0
    %184 = vmatpush1.msra.mxu0 0.0
    %185 = vmatprep.subr.mxu0 0.0
    %186 = vmatpush1.msra.mxu0 0.0
    %187 = vmatprep.subr.mxu0 0.0
    %188 = vmatpush1.msra.mxu0 0.0
    %189 = vmatprep.subr.mxu0 0.0
    %190 = vmatpush1.msra.mxu0 0.0
    %191 = vmatprep.subr.mxu0 0.0
    %192 = vmatpush1.msra.mxu0 0.0
    %193 = vmatprep.subr.mxu0 0.0
    %194 = vmatpush1.msra.mxu0 0.0
    %195 = vmatprep.subr.mxu0 0.0
    %196 = vmatpush1.msra.mxu0 0.0
    %197 = vmatprep.subr.mxu0 0.0
    %198 = vmatpush1.msra.mxu0 0.0
    %199 = vmatprep.subr.mxu0 0.0
    %200 = vmatpush1.msra.mxu0 0.0
    %201 = vmatprep.subr.mxu0 0.0
    %202 = vmatpush1.msra.mxu0 0.0
    %203 = vmatprep.subr.mxu0 0.0
    %204 = vmatpush1.msra.mxu0 0.0
    %205 = vmatprep.subr.mxu0 0.0
    %206 = vmatpush1.msra.mxu0 0.0
    %207 = vmatprep.subr.mxu0 0.0
    %208 = vmatpush1.msra.mxu0 0.0
    %209 = vmatprep.subr.mxu0 0.0
    %210 = vmatpush1.msra.mxu0 0.0
    %211 = vmatprep.subr.mxu0 0.0
    %212 = vmatpush1.msra.mxu0 0.0
    %213 = vmatprep.subr.mxu0 0.0
    %214 = vmatpush1.msra.mxu0 0.0
    %215 = vmatprep.subr.mxu0 0.0
    %216 = vmatpush1.msra.mxu0 0.0
    %217 = vmatprep.subr.mxu0 0.0
    %218 = vmatpush1.msra.mxu0 0.0
    %219 = vmatprep.subr.mxu0 0.0
    %220 = vmatpush1.msra.mxu0 0.0
    %221 = vmatprep.subr.mxu0 0.0
    %222 = vmatpush1.msra.mxu0 0.0
    %223 = vmatprep.subr.mxu0 0.0
    %224 = vmatpush1.msra.mxu0 0.0
    %225 = vmatprep.subr.mxu0 0.0
    %226 = vmatpush1.msra.mxu0 0.0
    %227 = vmatprep.subr.mxu0 0.0
    %228 = vmatpush1.msra.mxu0 0.0
    %229 = vmatprep.mubr.f32.mxu0 0.0
    %230 = vmatmul.mubr.f32.gmra.mrb[0].mxu0 %v160
    %v231 = vpop.f32.mrb[0].mxu0
    %v232 = vadd.f32 0.0, %v231
    %v233 = vpop.f32.mrb[0].mxu0
    %234 = vmatprep.mubr.f32.mxu0 0.0
    %235 = vmatmul.mubr.f32.gmra.mrb[0].mxu0 %v163
    %v236 = vpop.f32.mrb[0].mxu0
    %v237 = vadd.f32 0.0, %v236
    %v238 = vpop.f32.mrb[0].mxu0
    %239 = vdwg.mxu0
    %v240 = vmax.f32 %v232, 0.0
    %v241 = vmax.f32 %v237, 0.0
    %v242 = vpack.c.bf16 %v241, %v240
    %s243 = scalar_lea.vmem %s4, 64
    %v244 = vld [vmem:[%s243] sm:$0xf]
    %v245 = vld [vmem:[%s243 + $0x4] sm:$0xf]
    %v246 = vld [vmem:[%s243 + $0x8] sm:$0xf]
    %v247 = vld [vmem:[%s243 + $0xc] sm:$0xf]
    %v248 = vld [vmem:[%s243 + $0x10] sm:$0xf]
    %v249 = vld [vmem:[%s243 + $0x14] sm:$0xf]
    %v250 = vld [vmem:[%s243 + $0x18] sm:$0xf]
    %v251 = vld [vmem:[%s243 + $0x1c] sm:$0xf]
    %v252 = vld [vmem:[%s243 + $0x20] sm:$0xf]
    %v253 = vld [vmem:[%s243 + $0x24] sm:$0xf]
    %v254 = vld [vmem:[%s243 + $0x28] sm:$0xf]
    %v255 = vld [vmem:[%s243 + $0x2c] sm:$0xf]
    %v256 = vld [vmem:[%s243 + $0x30] sm:$0xf]
    %v257 = vld [vmem:[%s243 + $0x34] sm:$0xf]
    %v258 = vld [vmem:[%s243 + $0x38] sm:$0xf]
    %v259 = vld [vmem:[%s243 + $0x3c] sm:$0xf]
    %v276 = vunpack.c.l.b16 %v244
    %v277 = vunpack.c.l.b16 %v245
    %v278 = vunpack.c.l.b16 %v246
    %v279 = vunpack.c.l.b16 %v247
    %v280 = vunpack.c.l.b16 %v248
    %v281 = vunpack.c.l.b16 %v249
    %v282 = vunpack.c.l.b16 %v250
    %v283 = vunpack.c.l.b16 %v251
    %v284 = vunpack.c.l.b16 %v252
    %v285 = vunpack.c.l.b16 %v253
    %v286 = vunpack.c.l.b16 %v254
    %v287 = vunpack.c.l.b16 %v255
    %v288 = vunpack.c.l.b16 %v256
    %v289 = vunpack.c.l.b16 %v257
    %v290 = vunpack.c.l.b16 %v258
    %v291 = vunpack.c.l.b16 %v259
    %v292 = vpack.c.b16 %v277, %v276
    %v293 = vpack.c.b16 %v279, %v278
    %v294 = vpack.c.b16 %v281, %v280
    %v295 = vpack.c.b16 %v283, %v282
    %v296 = vpack.c.b16 %v285, %v284
    %v297 = vpack.c.b16 %v287, %v286
    %v298 = vpack.c.b16 %v289, %v288
    %v299 = vpack.c.b16 %v291, %v290
    %308 = vmatprep.subr.bf16.mxu0 0
    %309 = vmatpush1.bf16.msra.mxu0 %v292
    %310 = vmatprep.subr.bf16.mxu0 0
    %311 = vmatpush1.bf16.msra.mxu0 %v293
    %312 = vmatprep.subr.bf16.mxu0 0
    %313 = vmatpush1.bf16.msra.mxu0 %v294
    %314 = vmatprep.subr.bf16.mxu0 0
    %315 = vmatpush1.bf16.msra.mxu0 %v295
    %316 = vmatprep.subr.bf16.mxu0 0
    %317 = vmatpush1.bf16.msra.mxu0 %v296
    %318 = vmatprep.subr.bf16.mxu0 0
    %319 = vmatpush1.bf16.msra.mxu0 %v297
    %320 = vmatprep.subr.bf16.mxu0 0
    %321 = vmatpush1.bf16.msra.mxu0 %v298
    %322 = vmatprep.subr.bf16.mxu0 0
    %323 = vmatpush1.bf16.msra.mxu0 %v299
    %324 = vmatprep.subr.bf16.mxu0 0
    %325 = vmatpush1.bf16.msra.mxu0 0
    %326 = vmatprep.subr.bf16.mxu0 0
    %327 = vmatpush1.bf16.msra.mxu0 0
    %328 = vmatprep.subr.bf16.mxu0 0
    %329 = vmatpush1.bf16.msra.mxu0 0
    %330 = vmatprep.subr.bf16.mxu0 0
    %331 = vmatpush1.bf16.msra.mxu0 0
    %332 = vmatprep.subr.bf16.mxu0 0
    %333 = vmatpush1.bf16.msra.mxu0 0
    %334 = vmatprep.subr.bf16.mxu0 0
    %335 = vmatpush1.bf16.msra.mxu0 0
    %336 = vmatprep.subr.bf16.mxu0 0
    %337 = vmatpush1.bf16.msra.mxu0 0
    %338 = vmatprep.subr.bf16.mxu0 0
    %339 = vmatpush1.bf16.msra.mxu0 0
    %340 = vmatprep.mubr.bf16.mxu0 0
    %341 = vmatmul.mubr.bf16.gmra.mrb[0].mxu0 %v242
    %v342 = vpop.f32.mrb[0].mxu0
    %v343 = vadd.f32 0.0, %v342
    %v344 = vpop.f32.mrb[0].mxu0
    %v345 = vpop.f32.mrb[0].mxu0
    %v346 = vadd.f32 0.0, %v345
    %v347 = vpop.f32.mrb[0].mxu0
    %348 = vdwg.mxu0
    %v365 = vunpack.c.l.b16 %v30
    %v366 = vunpack.c.l.b16 %v31
    %v367 = vunpack.c.l.b16 %v32
    %v368 = vunpack.c.l.b16 %v33
    %v369 = vunpack.c.l.b16 %v34
    %v370 = vunpack.c.l.b16 %v35
    %v371 = vunpack.c.l.b16 %v36
    %v372 = vunpack.c.l.b16 %v37
    %v373 = vunpack.c.l.b16 %v38
    %v374 = vunpack.c.l.b16 %v39
    %v375 = vunpack.c.l.b16 %v40
    %v376 = vunpack.c.l.b16 %v41
    %v377 = vunpack.c.l.b16 %v42
    %v378 = vunpack.c.l.b16 %v43
    %v379 = vunpack.c.l.b16 %v44
    %v380 = vunpack.c.l.b16 %v45
    %v381 = vpack.c.b16 %v366, %v365
    %v382 = vpack.c.b16 %v368, %v367
    %v383 = vpack.c.b16 %v370, %v369
    %v384 = vpack.c.b16 %v372, %v371
    %v385 = vpack.c.b16 %v374, %v373
    %v386 = vpack.c.b16 %v376, %v375
    %v387 = vpack.c.b16 %v378, %v377
    %v388 = vpack.c.b16 %v380, %v379
    %397 = vmatprep.subr.bf16.mxu0 0
    %398 = vmatpush1.bf16.msra.mxu0 %v381
    %399 = vmatprep.subr.bf16.mxu0 0
    %400 = vmatpush1.bf16.msra.mxu0 %v382
    %401 = vmatprep.subr.bf16.mxu0 0
    %402 = vmatpush1.bf16.msra.mxu0 %v383
    %403 = vmatprep.subr.bf16.mxu0 0
    %404 = vmatpush1.bf16.msra.mxu0 %v384
    %405 = vmatprep.subr.bf16.mxu0 0
    %406 = vmatpush1.bf16.msra.mxu0 %v385
    %407 = vmatprep.subr.bf16.mxu0 0
    %408 = vmatpush1.bf16.msra.mxu0 %v386
    %409 = vmatprep.subr.bf16.mxu0 0
    %410 = vmatpush1.bf16.msra.mxu0 %v387
    %411 = vmatprep.subr.bf16.mxu0 0
    %412 = vmatpush1.bf16.msra.mxu0 %v388
    %413 = vmatprep.subr.bf16.mxu0 0
    %414 = vmatpush1.bf16.msra.mxu0 0
    %415 = vmatprep.subr.bf16.mxu0 0
    %416 = vmatpush1.bf16.msra.mxu0 0
    %417 = vmatprep.subr.bf16.mxu0 0
    %418 = vmatpush1.bf16.msra.mxu0 0
    %419 = vmatprep.subr.bf16.mxu0 0
    %420 = vmatpush1.bf16.msra.mxu0 0
    %421 = vmatprep.subr.bf16.mxu0 0
    %422 = vmatpush1.bf16.msra.mxu0 0
    %423 = vmatprep.subr.bf16.mxu0 0
    %424 = vmatpush1.bf16.msra.mxu0 0
    %425 = vmatprep.subr.bf16.mxu0 0
    %426 = vmatpush1.bf16.msra.mxu0 0
    %427 = vmatprep.subr.bf16.mxu0 0
    %428 = vmatpush1.bf16.msra.mxu0 0
    %429 = vmatprep.mubr.bf16.mxu0 0
    %430 = vmatmul.mubr.bf16.gmra.mrb[0].mxu0 %v29
    %v431 = vpop.f32.mrb[0].mxu0
    %v432 = vadd.f32 %v343, %v431
    %v433 = vpop.f32.mrb[0].mxu0
    %v434 = vpop.f32.mrb[0].mxu0
    %v435 = vadd.f32 %v346, %v434
    %v436 = vpop.f32.mrb[0].mxu0
    %437 = vdwg.mxu0
    %s438 = scalar_lea.vmem %s2, 64
    %v439 = vld [vmem:[%s438] sm:$0xf]
    %v440 = vld [vmem:[%s438 + $0x4] sm:$0xf]
    %v441 = vld [vmem:[%s438 + $0x8] sm:$0xf]
    %v442 = vld [vmem:[%s438 + $0xc] sm:$0xf]
    %v443 = vld [vmem:[%s438 + $0x10] sm:$0xf]
    %v444 = vld [vmem:[%s438 + $0x14] sm:$0xf]
    %v445 = vld [vmem:[%s438 + $0x18] sm:$0xf]
    %v446 = vld [vmem:[%s438 + $0x1c] sm:$0xf]
    %v447 = vld [vmem:[%s438 + $0x20] sm:$0xf]
    %v448 = vld [vmem:[%s438 + $0x24] sm:$0xf]
    %v449 = vld [vmem:[%s438 + $0x28] sm:$0xf]
    %v450 = vld [vmem:[%s438 + $0x2c] sm:$0xf]
    %v451 = vld [vmem:[%s438 + $0x30] sm:$0xf]
    %v452 = vld [vmem:[%s438 + $0x34] sm:$0xf]
    %v453 = vld [vmem:[%s438 + $0x38] sm:$0xf]
    %v454 = vld [vmem:[%s438 + $0x3c] sm:$0xf]
    %s455 = scalar_lea.vmem %s3, 1
    %v456 = vld [vmem:[%s455] sm:$0x1]
    %v458 = vlaneseq
    %v459 = vshrl.u32 %v458, 7
    %v460 = vsub.s32 0, %v459
    %v461 = vrot.slane %v456, %v460
    %v479 = vunpack.c.l.b16 %v439
    %v480 = vunpack.c.l.b16 %v440
    %v481 = vunpack.c.l.b16 %v441
    %v482 = vunpack.c.l.b16 %v442
    %v483 = vunpack.c.l.b16 %v443
    %v484 = vunpack.c.l.b16 %v444
    %v485 = vunpack.c.l.b16 %v445
    %v486 = vunpack.c.l.b16 %v446
    %v487 = vunpack.c.l.b16 %v447
    %v488 = vunpack.c.l.b16 %v448
    %v489 = vunpack.c.l.b16 %v449
    %v490 = vunpack.c.l.b16 %v450
    %v491 = vunpack.c.l.b16 %v451
    %v492 = vunpack.c.l.b16 %v452
    %v493 = vunpack.c.l.b16 %v453
    %v494 = vunpack.c.l.b16 %v454
    %v495 = vpack.c.b16 %v480, %v479
    %v496 = vpack.c.b16 %v482, %v481
    %v497 = vpack.c.b16 %v484, %v483
    %v498 = vpack.c.b16 %v486, %v485
    %v499 = vpack.c.b16 %v488, %v487
    %v500 = vpack.c.b16 %v490, %v489
    %v501 = vpack.c.b16 %v492, %v491
    %v502 = vpack.c.b16 %v494, %v493
    %511 = vmatprep.subr.bf16.mxu0 0
    %512 = vmatpush1.bf16.msra.mxu0 %v495
    %513 = vmatprep.subr.bf16.mxu0 0
    %514 = vmatpush1.bf16.msra.mxu0 %v496
    %515 = vmatprep.subr.bf16.mxu0 0
    %516 = vmatpush1.bf16.msra.mxu0 %v497
    %517 = vmatprep.subr.bf16.mxu0 0
    %518 = vmatpush1.bf16.msra.mxu0 %v498
    %519 = vmatprep.subr.bf16.mxu0 0
    %520 = vmatpush1.bf16.msra.mxu0 %v499
    %521 = vmatprep.subr.bf16.mxu0 0
    %522 = vmatpush1.bf16.msra.mxu0 %v500
    %523 = vmatprep.subr.bf16.mxu0 0
    %524 = vmatpush1.bf16.msra.mxu0 %v501
    %525 = vmatprep.subr.bf16.mxu0 0
    %526 = vmatpush1.bf16.msra.mxu0 %v502
    %527 = vmatprep.subr.bf16.mxu0 0
    %528 = vmatpush1.bf16.msra.mxu0 0
    %529 = vmatprep.subr.bf16.mxu0 0
    %530 = vmatpush1.bf16.msra.mxu0 0
    %531 = vmatprep.subr.bf16.mxu0 0
    %532 = vmatpush1.bf16.msra.mxu0 0
    %533 = vmatprep.subr.bf16.mxu0 0
    %534 = vmatpush1.bf16.msra.mxu0 0
    %535 = vmatprep.subr.bf16.mxu0 0
    %536 = vmatpush1.bf16.msra.mxu0 0
    %537 = vmatprep.subr.bf16.mxu0 0
    %538 = vmatpush1.bf16.msra.mxu0 0
    %539 = vmatprep.subr.bf16.mxu0 0
    %540 = vmatpush1.bf16.msra.mxu0 0
    %541 = vmatprep.subr.bf16.mxu0 0
    %542 = vmatpush1.bf16.msra.mxu0 0
    %543 = vmatprep.mubr.bf16.mxu0 0
    %544 = vmatmul.mubr.bf16.gmra.mrb[0].mxu0 %v242
    %v545 = vpop.f32.mrb[0].mxu0
    %v546 = vadd.f32 %v461, %v545
    %v547 = vpop.f32.mrb[0].mxu0
    %v548 = vpop.f32.mrb[0].mxu0
    %v549 = vadd.f32 %v461, %v548
    %v550 = vpop.f32.mrb[0].mxu0
    %551 = vdwg.mxu0
    %552 = vmatprep.subr.mxu0 0.0
    %553 = vmatpush1.msra.mxu0 %v546
    %554 = vmatprep.subr.mxu0 0.0
    %555 = vmatpush1.msra.mxu0 %v549
    %556 = vmatprep.subr.mxu0 0.0
    %557 = vmatpush1.msra.mxu0 0.0
    %558 = vmatprep.subr.mxu0 0.0
    %559 = vmatpush1.msra.mxu0 0.0
    %560 = vmatprep.subr.mxu0 0.0
    %561 = vmatpush1.msra.mxu0 0.0
    %562 = vmatprep.subr.mxu0 0.0
    %563 = vmatpush1.msra.mxu0 0.0
    %564 = vmatprep.subr.mxu0 0.0
    %565 = vmatpush1.msra.mxu0 0.0
    %566 = vmatprep.subr.mxu0 0.0
    %567 = vmatpush1.msra.mxu0 0.0
    %568 = vmatprep.subr.mxu0 0.0
    %569 = vmatpush1.msra.mxu0 0.0
    %570 = vmatprep.subr.mxu0 0.0
    %571 = vmatpush1.msra.mxu0 0.0
    %572 = vmatprep.subr.mxu0 0.0
    %573 = vmatpush1.msra.mxu0 0.0
    %574 = vmatprep.subr.mxu0 0.0
    %575 = vmatpush1.msra.mxu0 0.0
    %576 = vmatprep.subr.mxu0 0.0
    %577 = vmatpush1.msra.mxu0 0.0
    %578 = vmatprep.subr.mxu0 0.0
    %579 = vmatpush1.msra.mxu0 0.0
    %580 = vmatprep.subr.mxu0 0.0
    %581 = vmatpush1.msra.mxu0 0.0
    %582 = vmatprep.subr.mxu0 0.0
    %583 = vmatpush1.msra.mxu0 0.0
    %584 = vmatprep.subr.mxu0 0.0
    %585 = vmatpush1.msra.mxu0 0.0
    %586 = vmatprep.subr.mxu0 0.0
    %587 = vmatpush1.msra.mxu0 0.0
    %588 = vmatprep.subr.mxu0 0.0
    %589 = vmatpush1.msra.mxu0 0.0
    %590 = vmatprep.subr.mxu0 0.0
    %591 = vmatpush1.msra.mxu0 0.0
    %592 = vmatprep.subr.mxu0 0.0
    %593 = vmatpush1.msra.mxu0 0.0
    %594 = vmatprep.subr.mxu0 0.0
    %595 = vmatpush1.msra.mxu0 0.0
    %596 = vmatprep.subr.mxu0 0.0
    %597 = vmatpush1.msra.mxu0 0.0
    %598 = vmatprep.subr.mxu0 0.0
    %599 = vmatpush1.msra.mxu0 0.0
    %600 = vmatprep.subr.mxu0 0.0
    %601 = vmatpush1.msra.mxu0 0.0
    %602 = vmatprep.subr.mxu0 0.0
    %603 = vmatpush1.msra.mxu0 0.0
    %604 = vmatprep.subr.mxu0 0.0
    %605 = vmatpush1.msra.mxu0 0.0
    %606 = vmatprep.subr.mxu0 0.0
    %607 = vmatpush1.msra.mxu0 0.0
    %608 = vmatprep.subr.mxu0 0.0
    %609 = vmatpush1.msra.mxu0 0.0
    %610 = vmatprep.subr.mxu0 0.0
    %611 = vmatpush1.msra.mxu0 0.0
    %612 = vmatprep.subr.mxu0 0.0
    %613 = vmatpush1.msra.mxu0 0.0
    %614 = vmatprep.subr.mxu0 0.0
    %615 = vmatpush1.msra.mxu0 0.0
    %616 = vmatprep.mubr.f32.mxu0 0.0
    %617 = vmatmul.mubr.f32.gmra.mrb[0].mxu0 %v160
    %v618 = vpop.f32.mrb[0].mxu0
    %v619 = vadd.f32 0.0, %v618
    %v620 = vpop.f32.mrb[0].mxu0
    %621 = vmatprep.mubr.f32.mxu0 0.0
    %622 = vmatmul.mubr.f32.gmra.mrb[0].mxu0 %v163
    %v623 = vpop.f32.mrb[0].mxu0
    %v624 = vadd.f32 0.0, %v623
    %v625 = vpop.f32.mrb[0].mxu0
    %626 = vdwg.mxu0
    %v627 = vmax.f32 %v619, 0.0
    %v628 = vmax.f32 %v624, 0.0
    %v629 = vpack.c.bf16 %v628, %v627
    %s630 = scalar_lea.vmem %s4, 128
    %v631 = vld [vmem:[%s630] sm:$0xf]
    %v632 = vld [vmem:[%s630 + $0x4] sm:$0xf]
    %v633 = vld [vmem:[%s630 + $0x8] sm:$0xf]
    %v634 = vld [vmem:[%s630 + $0xc] sm:$0xf]
    %v635 = vld [vmem:[%s630 + $0x10] sm:$0xf]
    %v636 = vld [vmem:[%s630 + $0x14] sm:$0xf]
    %v637 = vld [vmem:[%s630 + $0x18] sm:$0xf]
    %v638 = vld [vmem:[%s630 + $0x1c] sm:$0xf]
    %v639 = vld [vmem:[%s630 + $0x20] sm:$0xf]
    %v640 = vld [vmem:[%s630 + $0x24] sm:$0xf]
    %v641 = vld [vmem:[%s630 + $0x28] sm:$0xf]
    %v642 = vld [vmem:[%s630 + $0x2c] sm:$0xf]
    %v643 = vld [vmem:[%s630 + $0x30] sm:$0xf]
    %v644 = vld [vmem:[%s630 + $0x34] sm:$0xf]
    %v645 = vld [vmem:[%s630 + $0x38] sm:$0xf]
    %v646 = vld [vmem:[%s630 + $0x3c] sm:$0xf]
    %v663 = vunpack.c.l.b16 %v631
    %v664 = vunpack.c.l.b16 %v632
    %v665 = vunpack.c.l.b16 %v633
    %v666 = vunpack.c.l.b16 %v634
    %v667 = vunpack.c.l.b16 %v635
    %v668 = vunpack.c.l.b16 %v636
    %v669 = vunpack.c.l.b16 %v637
    %v670 = vunpack.c.l.b16 %v638
    %v671 = vunpack.c.l.b16 %v639
    %v672 = vunpack.c.l.b16 %v640
    %v673 = vunpack.c.l.b16 %v641
    %v674 = vunpack.c.l.b16 %v642
    %v675 = vunpack.c.l.b16 %v643
    %v676 = vunpack.c.l.b16 %v644
    %v677 = vunpack.c.l.b16 %v645
    %v678 = vunpack.c.l.b16 %v646
    %v679 = vpack.c.b16 %v664, %v663
    %v680 = vpack.c.b16 %v666, %v665
    %v681 = vpack.c.b16 %v668, %v667
    %v682 = vpack.c.b16 %v670, %v669
    %v683 = vpack.c.b16 %v672, %v671
    %v684 = vpack.c.b16 %v674, %v673
    %v685 = vpack.c.b16 %v676, %v675
    %v686 = vpack.c.b16 %v678, %v677
    %695 = vmatprep.subr.bf16.mxu0 0
    %696 = vmatpush1.bf16.msra.mxu0 %v679
    %697 = vmatprep.subr.bf16.mxu0 0
    %698 = vmatpush1.bf16.msra.mxu0 %v680
    %699 = vmatprep.subr.bf16.mxu0 0
    %700 = vmatpush1.bf16.msra.mxu0 %v681
    %701 = vmatprep.subr.bf16.mxu0 0
    %702 = vmatpush1.bf16.msra.mxu0 %v682
    %703 = vmatprep.subr.bf16.mxu0 0
    %704 = vmatpush1.bf16.msra.mxu0 %v683
    %705 = vmatprep.subr.bf16.mxu0 0
    %706 = vmatpush1.bf16.msra.mxu0 %v684
    %707 = vmatprep.subr.bf16.mxu0 0
    %708 = vmatpush1.bf16.msra.mxu0 %v685
    %709 = vmatprep.subr.bf16.mxu0 0
    %710 = vmatpush1.bf16.msra.mxu0 %v686
    %711 = vmatprep.subr.bf16.mxu0 0
    %712 = vmatpush1.bf16.msra.mxu0 0
    %713 = vmatprep.subr.bf16.mxu0 0
    %714 = vmatpush1.bf16.msra.mxu0 0
    %715 = vmatprep.subr.bf16.mxu0 0
    %716 = vmatpush1.bf16.msra.mxu0 0
    %717 = vmatprep.subr.bf16.mxu0 0
    %718 = vmatpush1.bf16.msra.mxu0 0
    %719 = vmatprep.subr.bf16.mxu0 0
    %720 = vmatpush1.bf16.msra.mxu0 0
    %721 = vmatprep.subr.bf16.mxu0 0
    %722 = vmatpush1.bf16.msra.mxu0 0
    %723 = vmatprep.subr.bf16.mxu0 0
    %724 = vmatpush1.bf16.msra.mxu0 0
    %725 = vmatprep.subr.bf16.mxu0 0
    %726 = vmatpush1.bf16.msra.mxu0 0
    %727 = vmatprep.mubr.bf16.mxu0 0
    %728 = vmatmul.mubr.bf16.gmra.mrb[0].mxu0 %v629
    %v729 = vpop.f32.mrb[0].mxu0
    %v730 = vadd.f32 0.0, %v729
    %v731 = vpop.f32.mrb[0].mxu0
    %v732 = vpop.f32.mrb[0].mxu0
    %v733 = vadd.f32 0.0, %v732
    %v734 = vpop.f32.mrb[0].mxu0
    %735 = vdwg.mxu0
    %v736 = vadd.f32 %v432, %v730
    %v737 = vadd.f32 %v435, %v733
    %v738 = vld [vmem:[%s5] sm:$0x1]
    %v740 = vlaneseq
    %v741 = vshrl.u32 %v740, 7
    %v742 = vsub.s32 0, %v741
    %v743 = vrot.slane %v738, %v742
    %v745 = vadd.f32 %v736, %v743
    %v746 = vadd.f32 %v737, %v743
    %747 = vst [vmem:[#allocation2] sm:$0xff] %v745
    %748 = vst [vmem:[#allocation2 + $0x8] sm:$0xff] %v746
    // Predicated region
    $region26: #{euclidean_gcn_forward.1} parent=1 // pred_check
      _
    $region27: #{euclidean_gcn_forward.1} parent=1 // pred_check_branch
      %750 = sbr.rel (0) target = $region29
    $region28: #{euclidean_gcn_forward.1} parent=1 // pred_region
      %s752 = ssub.s32 256, 256
      %753 = vsyncadd [#allocation3], %s752
      %s754 = sshll.u32 [#allocation2], 4
      %s755 = int_to_ptr.vmem [resolvable:$true] %s754
      %760 = dma.vmem_to_hbm [thread:$0]  %s755, 256, %s6, [#allocation3], 128, 128, 8
    $region29: #{euclidean_gcn_forward.1} parent=1 // pred_fallthru
      _
    // Predicated region
    $region30: #{euclidean_gcn_forward.1} parent=1 // pred_check
      _
    $region31: #{euclidean_gcn_forward.1} parent=1 // pred_check_branch
      %762 = sbr.rel (0) target = $region33
    $region32: #{euclidean_gcn_forward.1} parent=1 // pred_region
      %763 = dma.done [#allocation3], 256
    $region33: #{euclidean_gcn_forward.1} parent=1 // pred_fallthru
      _
    %764 = vsyncpa [#allocation3], 1

</llo_original>
